<compile_context>
chip_gen: v6e
topology: v6e:2x2x1
jax: 0.10.0
libtpu: 0.0.40
codegen_flags: <defaults>
</compile_context>

<pallas_src>
import jax
import jax.numpy as jnp
from jax.experimental import pallas as pl
from jax.experimental.pallas import tpu as pltpu


def _complex_linear_kernel(x_ref, m_ref, b_ref, o_ref):
    # x_ref : (TB, D) float32
    # m_ref : (2, D)  float32  -- rows [Re(M), Im(M)]
    # b_ref : (2, 1)  float32  -- [Re(b); Im(b)]
    # o_ref : (2, TB) float32  -- rows [Re(out), Im(out)]  (lane-dense)
    y = jax.lax.dot_general(
        m_ref[...],                      # (2, D)
        x_ref[...],                      # (TB, D)
        dimension_numbers=(((1,), (1,)), ((), ())),   # contract D -> (2, TB)
        preferred_element_type=jnp.float32,
        precision=jax.lax.Precision.HIGHEST,  # true-f32 MXU passes (complex128 stand-in)
    )
    o_ref[...] = y + b_ref[...]          # (2, TB) + (2, 1) broadcast


def _choose_tb(B, D, max_tile_bytes=16 * 1024 * 1024):
    """Batch tile: as large as the byte budget allows (multiple of 128), but
    keep >= 2 (ideally >= 4) grid steps so v7x's two TCs can both stream."""
    if B <= 128:
        # Single block; TB == full batch dim satisfies the tiling rules.
        return B
    tb_budget = max(128, (max_tile_bytes // max(1, D * 4)) // 128 * 128)
    min_steps = 4 if B >= 512 else 2
    tb_split = max(128, (B // min_steps) // 128 * 128)
    return min(tb_budget, tb_split)


def complex_linear(x, m_ri, b_ri):
    """x: (B, D) float32; m_ri: (2, D) float32 rows [Re(M), Im(M)];
    b_ri: (2, 1) float32 [Re(b); Im(b)].

    Returns complex64 array of shape (B, 1), matching `x @ M + b`.
    """
    x = jnp.asarray(x, jnp.float32)
    m_ri = jnp.asarray(m_ri, jnp.float32)
    b_ri = jnp.asarray(b_ri, jnp.float32)

    B, D = x.shape
    TB = _choose_tb(B, D)
    grid = (pl.cdiv(B, TB),)

    cost = pl.CostEstimate(
        flops=4 * B * D + 2 * B,
        transcendentals=0,
        bytes_accessed=4 * B * D + 8 * B + 8 * D + 8,
    )

    y = pl.pallas_call(
        _complex_linear_kernel,
        out_shape=jax.ShapeDtypeStruct((2, B), jnp.float32),
        grid_spec=pltpu.PrefetchScalarGridSpec(
            num_scalar_prefetch=0,
            grid=grid,
            in_specs=[
                # x: streamed / double-buffered over the batch grid (partial
                # last block handled by Pallas; no wrapper-side padding).
                pl.BlockSpec((TB, D), lambda i: (i, 0)),
                # weight + bias: constant index_map -> VMEM-resident.
                pl.BlockSpec((2, D), lambda i: (0, 0)),
                pl.BlockSpec((2, 1), lambda i: (0, 0)),
            ],
            # Lane-dense output: (2, TB) blocks into a (2, B) slab.
            out_specs=pl.BlockSpec((2, TB), lambda i: (0, i)),
        ),
        compiler_params=pltpu.CompilerParams(
            # Batch tiles are independent -> shard across v7x's two TCs.
            dimension_semantics=("parallel",),
            vmem_limit_bytes=48 * 1024 * 1024,
        ),
        cost_estimate=cost,
    )(x, m_ri, b_ri)

    # Recombine Re/Im rows into a complex (B, 1) output.
    return (y[0] + 1j * y[1])[:, None].astype(jnp.complex64)


def _reference(x, m_ri, b_ri):
    M_c = m_ri[0] + 1j * m_ri[1]                  # (D,)
    b_c = b_ri[0, 0] + 1j * b_ri[1, 0]            # scalar
    return x.astype(jnp.complex64) @ M_c[:, None] + b_c


if __name__ == "__main__":
    input_dim = 32
    batch = 8
    iscale = 0.001

    key = jax.random.PRNGKey(0)
    k_m, k_b, k_x, k_x2 = jax.random.split(key, 4)

    # Deterministic parameter init, mirroring torch.rand(...) * iscale.
    # M_r: (input_dim, 1, 2) complex-as-real -> stored lane-major as (2, input_dim).
    m_r = jax.random.uniform(k_m, (input_dim, 1, 2), dtype=jnp.float32) * iscale
    b_r = jax.random.uniform(k_b, (1, 2), dtype=jnp.float32) * iscale
    m_ri = m_r.reshape(input_dim, 2).T            # (2, D): rows [Re(M), Im(M)]
    b_ri = b_r.reshape(1, 2).T                    # (2, 1): [Re(b); Im(b)]

    # --- main check: small batch (single block) ---------------------------
    x = jax.random.normal(k_x, (batch, input_dim), dtype=jnp.float32)
    out = complex_linear(x, m_ri, b_ri)
    out = jax.block_until_ready(out)
    ref = _reference(x, m_ri, b_ri)
    assert out.shape == (batch, 1) and out.dtype == jnp.complex64
    assert jnp.allclose(out, ref, atol=1e-6, rtol=1e-5)

    # --- secondary check: B % TB != 0 exercises the masked partial block --
    batch2 = 300                                   # TB=128 -> grid=3, last block partial
    x2 = jax.random.normal(k_x2, (batch2, input_dim), dtype=jnp.float32)
    out2 = jax.block_until_ready(complex_linear(x2, m_ri, b_ri))
    ref2 = _reference(x2, m_ri, b_ri)
    assert out2.shape == (batch2, 1) and out2.dtype == jnp.complex64
    assert jnp.allclose(out2, ref2, atol=1e-6, rtol=1e-5)

    print("KERNEL_OK")
</pallas_src>

<mosaic_0001>
module attributes {stable_mosaic.version = 11 : i64} {
  func.func @_complex_linear_kernel(%arg0: i32, %arg1: memref<8x32xf32, #tpu.memory_space<vmem>>, %arg2: memref<2x32xf32, #tpu.memory_space<vmem>>, %arg3: memref<2x1xf32, #tpu.memory_space<vmem>>, %arg4: memref<2x8xf32, #tpu.memory_space<vmem>>) attributes {dimension_semantics = [#tpu.dimension_semantics<parallel>], iteration_bounds = array<i64: 1>, scalar_prefetch = 0 : i64, scratch_operands = 0 : i64, tpu.core_type = #tpu.core_type<tc>, window_params = [{transform_indices = @transform_0, window_bounds = array<i64: 8, 32>}, {pipeline_mode = #tpu.pipeline_mode<synchronous>, transform_indices = @transform_1, window_bounds = array<i64: 2, 32>}, {pipeline_mode = #tpu.pipeline_mode<synchronous>, transform_indices = @transform_2, window_bounds = array<i64: 2, 1>}, {transform_indices = @transform_3, window_bounds = array<i64: 2, 8>}]} {
    %c0 = arith.constant 0 : index
    %c0_0 = arith.constant 0 : index
    %0 = vector.load %arg2[%c0, %c0_0] : memref<2x32xf32, #tpu.memory_space<vmem>>, vector<2x32xf32>
    %c0_1 = arith.constant 0 : index
    %c0_2 = arith.constant 0 : index
    %1 = vector.load %arg1[%c0_1, %c0_2] : memref<8x32xf32, #tpu.memory_space<vmem>>, vector<8x32xf32>
    %cst = arith.constant dense<0.000000e+00> : vector<2x8xf32>
    %2 = tpu.matmul %0, %1, %cst {dimension_numbers = #tpu.dot_dimension_numbers<[1], [1], [0], [0], [0, 0, 1, 0], [], []>, precision = #tpu.contract_precision<fp32>} : vector<2x32xf32>, vector<8x32xf32>, vector<2x8xf32> -> vector<2x8xf32>
    %c0_3 = arith.constant 0 : index
    %c0_4 = arith.constant 0 : index
    %3 = vector.load %arg3[%c0_3, %c0_4] : memref<2x1xf32, #tpu.memory_space<vmem>>, vector<2x1xf32>
    %4 = vector.broadcast %3 : vector<2x1xf32> to vector<2x8xf32>
    %5 = arith.addf %2, %4 : vector<2x8xf32>
    %c0_5 = arith.constant 0 : index
    %c0_6 = arith.constant 0 : index
    %6 = vector.load %arg4[%c0_5, %c0_6] : memref<2x8xf32, #tpu.memory_space<vmem>>, vector<2x8xf32>
    tpu.vector_store %arg4[%c0_5, %c0_6], %5 {strides = array<i32>} : memref<2x8xf32, #tpu.memory_space<vmem>>, vector<2x8xf32>,
    return
  }
  func.func @transform_0(%arg0: i32) -> (i32, i32) {
    %c0_i32 = arith.constant 0 : i32
    %c0_i32_0 = arith.constant 0 : i32
    return %arg0, %c0_i32 : i32, i32
  }
  func.func @transform_1(%arg0: i32) -> (i32, i32) {
    %c0_i32 = arith.constant 0 : i32
    %c0_i32_0 = arith.constant 0 : i32
    %c0_i32_1 = arith.constant 0 : i32
    return %c0_i32, %c0_i32_0 : i32, i32
  }
  func.func @transform_2(%arg0: i32) -> (i32, i32) {
    %c0_i32 = arith.constant 0 : i32
    %c0_i32_0 = arith.constant 0 : i32
    %c0_i32_1 = arith.constant 0 : i32
    return %c0_i32, %c0_i32_0 : i32, i32
  }
  func.func @transform_3(%arg0: i32) -> (i32, i32) {
    %c0_i32 = arith.constant 0 : i32
    %c0_i32_0 = arith.constant 0 : i32
    return %c0_i32, %arg0 : i32, i32
  }
}

</mosaic_0001>

<llo_original>
// kernel: tpu_custom_call.1
$region0: #{tpu_custom_call.1}
  #allocation0 [shape = 'u32[]', space=smem, size = 0x4, offset = 0x4, fixed_abs, tag = 'smem constant byte address 0x4 - core index']
  #allocation1 [shape = 'u32[144,128]{1,0:T(1,128)}', space=vmem, size = 0x12000, scoped, tag = 'internal scratch']
  %s0 = inlined_call_operand.hbm [shape: f32[8,32], index: 0, kind: input, shape index: {}]
  %s1 = inlined_call_operand.vmem [shape: f32[2,32], index: 1, kind: input, shape index: {}]
  %s2 = inlined_call_operand.vmem [shape: f32[2,1], index: 2, kind: input, shape index: {}]
  %s3 = inlined_call_operand.hbm [shape: f32[2,8], index: 3, kind: output, shape index: {}]
  %s4 = sld [smem:[#allocation0]]
  $region26: #{tpu_custom_call.1} parent=0
    _
  %s6 = ssub.s32 1, %s4
  %s7 = scalar_select 0, %s6, %s4
  $region1: #{tpu_custom_call.1} parent=0
    #allocation2 [shape = 'u8[4096]{0}', space=vmem, size = 0x1000, scoped, tag = 'input window, operand 0, single buffered']
    #allocation3 [shape = 's32[1]{0}', space=sflag, size = 0x4, scoped, tag = 'scoped memory for tpu_custom_call.1']
    #allocation4 [shape = 's32[1]{0}', space=sflag, size = 0x4, scoped, tag = 'scoped memory for tpu_custom_call.1']
    #allocation5 [shape = 'u8[1024]{0}', space=vmem, size = 0x400, scoped, tag = 'output window, operand 0, single buffered']
    %8 = vsyncpa [#allocation3], 0
    %9 = vsyncpa [#allocation4], 0
    // Predicated region
    $region2: #{tpu_custom_call.1} parent=1 // pred_check
      _
    $region3: #{tpu_custom_call.1} parent=1 // pred_check_branch
      %11 = sbr.rel (0) target = $region5
    $region4: #{tpu_custom_call.1} parent=1 // pred_region
      %s13 = ssub.s32 128, 128
      %14 = vsyncadd [#allocation3], %s13
      %s16 = sshll.u32 [#allocation2], 4
      %s17 = int_to_ptr.vmem [resolvable:$true] %s16
      %19 = dma.hbm_to_vmem [thread:$0]  %s0, 128, %s17, [#allocation3]
    $region5: #{tpu_custom_call.1} parent=1 // pred_fallthru
      _
    // Predicated region
    $region6: #{tpu_custom_call.1} parent=1 // pred_check
      _
    $region7: #{tpu_custom_call.1} parent=1 // pred_check_branch
      %21 = sbr.rel (0) target = $region9
    $region8: #{tpu_custom_call.1} parent=1 // pred_region
      _
    $region9: #{tpu_custom_call.1} parent=1 // pred_fallthru
      _
    // Predicated region
    $region10: #{tpu_custom_call.1} parent=1 // pred_check
      _
    $region11: #{tpu_custom_call.1} parent=1 // pred_check_branch
      %23 = sbr.rel (0) target = $region13
    $region12: #{tpu_custom_call.1} parent=1 // pred_region
      _
    $region13: #{tpu_custom_call.1} parent=1 // pred_fallthru
      _
    // Predicated region
    $region14: #{tpu_custom_call.1} parent=1 // pred_check
      _
    $region15: #{tpu_custom_call.1} parent=1 // pred_check_branch
      %25 = sbr.rel (0) target = $region17
    $region16: #{tpu_custom_call.1} parent=1 // pred_region
      %26 = dma.done [#allocation3], 128
    $region17: #{tpu_custom_call.1} parent=1 // pred_fallthru
      _
    %v27 = vld [vmem:[%s1] sm:$0x3]
    %v28 = vld [vmem:[#allocation2] sm:$0xff]
    %v29 = vld [vmem:[%s2] sm:$0x3]
    %31 = vset.pattern.permute.xlu0 0
    %32 = vperm.xlu0 %31, %v29
    %v33 = vpop.permute.xlu0 %32
    %vm35 = vcmask 261120
    %v37 = vsel %vm35, %v27, 0
    %v40 = vsel %vm35, %v28, 0
    %42 = vmatprep.subr.mxu0 0.0
    %43 = vmatpush1.xpose.msra.mxu0 0.0
    %44 = vmatprep.subr.mxu0 0.0
    %45 = vmatpush1.xpose.msra.mxu0 0.0
    %46 = vmatprep.subr.mxu0 0.0
    %47 = vmatpush1.xpose.msra.mxu0 0.0
    %48 = vmatprep.subr.mxu0 0.0
    %49 = vmatpush1.xpose.msra.mxu0 0.0
    %50 = vmatprep.subr.mxu0 0.0
    %51 = vmatpush1.xpose.msra.mxu0 0.0
    %52 = vmatprep.subr.mxu0 0.0
    %53 = vmatpush1.xpose.msra.mxu0 0.0
    %54 = vmatprep.subr.mxu0 0.0
    %55 = vmatpush1.xpose.msra.mxu0 0.0
    %56 = vmatprep.subr.mxu0 0.0
    %57 = vmatpush1.xpose.msra.mxu0 0.0
    %58 = vmatprep.subr.mxu0 0.0
    %59 = vmatpush1.xpose.msra.mxu0 0.0
    %60 = vmatprep.subr.mxu0 0.0
    %61 = vmatpush1.xpose.msra.mxu0 0.0
    %62 = vmatprep.subr.mxu0 0.0
    %63 = vmatpush1.xpose.msra.mxu0 0.0
    %64 = vmatprep.subr.mxu0 0.0
    %65 = vmatpush1.xpose.msra.mxu0 0.0
    %66 = vmatprep.subr.mxu0 0.0
    %67 = vmatpush1.xpose.msra.mxu0 0.0
    %68 = vmatprep.subr.mxu0 0.0
    %69 = vmatpush1.xpose.msra.mxu0 0.0
    %70 = vmatprep.subr.mxu0 0.0
    %71 = vmatpush1.xpose.msra.mxu0 0.0
    %72 = vmatprep.subr.mxu0 0.0
    %v73 = vand.u32 %v40, 4294901760
    %74 = vmatpush1.xpose.msra.mxu0 %v73
    %75 = vmatprep.subr.mxu0 0.0
    %76 = vmatpush2.xpose.msra.mxu0 0.0
    %77 = vmatprep.subr.mxu0 0.0
    %78 = vmatpush2.xpose.msra.mxu0 0.0
    %79 = vmatprep.subr.mxu0 0.0
    %80 = vmatpush2.xpose.msra.mxu0 0.0
    %81 = vmatprep.subr.mxu0 0.0
    %82 = vmatpush2.xpose.msra.mxu0 0.0
    %83 = vmatprep.subr.mxu0 0.0
    %84 = vmatpush2.xpose.msra.mxu0 0.0
    %85 = vmatprep.subr.mxu0 0.0
    %86 = vmatpush2.xpose.msra.mxu0 0.0
    %87 = vmatprep.subr.mxu0 0.0
    %88 = vmatpush2.xpose.msra.mxu0 0.0
    %89 = vmatprep.subr.mxu0 0.0
    %90 = vmatpush2.xpose.msra.mxu0 0.0
    %91 = vmatprep.subr.mxu0 0.0
    %92 = vmatpush2.xpose.msra.mxu0 0.0
    %93 = vmatprep.subr.mxu0 0.0
    %94 = vmatpush2.xpose.msra.mxu0 0.0
    %95 = vmatprep.subr.mxu0 0.0
    %96 = vmatpush2.xpose.msra.mxu0 0.0
    %97 = vmatprep.subr.mxu0 0.0
    %98 = vmatpush2.xpose.msra.mxu0 0.0
    %99 = vmatprep.subr.mxu0 0.0
    %100 = vmatpush2.xpose.msra.mxu0 0.0
    %101 = vmatprep.subr.mxu0 0.0
    %102 = vmatpush2.xpose.msra.mxu0 0.0
    %103 = vmatprep.subr.mxu0 0.0
    %104 = vmatpush2.xpose.msra.mxu0 0.0
    %105 = vmatprep.subr.mxu0 0.0
    %106 = vmatpush2.xpose.msra.mxu0 0.0
    %107 = vmatprep.mubr.f32.mxu0 0.0
    %v108 = vand.u32 %v37, 4294901760
    %v109 = vsub.f32 %v37, %v108
    %v110 = vand.u32 %v109, 4294901760
    %v111 = vsub.f32 %v109, %v110
    %v112 = vand.u32 %v111, 4294901760
    %113 = vmatmul.mubr.f32.gmra.mxu0 %v112
    %v114 = vpop.f32.mrf.mxu0
    %v115 = vadd.f32 %v33, %v114
    %v116 = vpop.f32.mrf.mxu0
    %117 = vdwg.mxu0
    %118 = vmatprep.subr.mxu0 0.0
    %119 = vmatpush1.xpose.msra.mxu0 0.0
    %120 = vmatprep.subr.mxu0 0.0
    %121 = vmatpush1.xpose.msra.mxu0 0.0
    %122 = vmatprep.subr.mxu0 0.0
    %123 = vmatpush1.xpose.msra.mxu0 0.0
    %124 = vmatprep.subr.mxu0 0.0
    %125 = vmatpush1.xpose.msra.mxu0 0.0
    %126 = vmatprep.subr.mxu0 0.0
    %127 = vmatpush1.xpose.msra.mxu0 0.0
    %128 = vmatprep.subr.mxu0 0.0
    %129 = vmatpush1.xpose.msra.mxu0 0.0
    %130 = vmatprep.subr.mxu0 0.0
    %131 = vmatpush1.xpose.msra.mxu0 0.0
    %132 = vmatprep.subr.mxu0 0.0
    %133 = vmatpush1.xpose.msra.mxu0 0.0
    %134 = vmatprep.subr.mxu0 0.0
    %135 = vmatpush1.xpose.msra.mxu0 0.0
    %136 = vmatprep.subr.mxu0 0.0
    %137 = vmatpush1.xpose.msra.mxu0 0.0
    %138 = vmatprep.subr.mxu0 0.0
    %139 = vmatpush1.xpose.msra.mxu0 0.0
    %140 = vmatprep.subr.mxu0 0.0
    %141 = vmatpush1.xpose.msra.mxu0 0.0
    %142 = vmatprep.subr.mxu0 0.0
    %143 = vmatpush1.xpose.msra.mxu0 0.0
    %144 = vmatprep.subr.mxu0 0.0
    %145 = vmatpush1.xpose.msra.mxu0 0.0
    %146 = vmatprep.subr.mxu0 0.0
    %147 = vmatpush1.xpose.msra.mxu0 0.0
    %148 = vmatprep.subr.mxu0 0.0
    %v149 = vand.u32 %v40, 4294901760
    %v150 = vsub.f32 %v40, %v149
    %v151 = vand.u32 %v150, 4294901760
    %v152 = vsub.f32 %v150, %v151
    %v153 = vand.u32 %v152, 4294901760
    %154 = vmatpush1.xpose.msra.mxu0 %v153
    %155 = vmatprep.subr.mxu0 0.0
    %156 = vmatpush2.xpose.msra.mxu0 0.0
    %157 = vmatprep.subr.mxu0 0.0
    %158 = vmatpush2.xpose.msra.mxu0 0.0
    %159 = vmatprep.subr.mxu0 0.0
    %160 = vmatpush2.xpose.msra.mxu0 0.0
    %161 = vmatprep.subr.mxu0 0.0
    %162 = vmatpush2.xpose.msra.mxu0 0.0
    %163 = vmatprep.subr.mxu0 0.0
    %164 = vmatpush2.xpose.msra.mxu0 0.0
    %165 = vmatprep.subr.mxu0 0.0
    %166 = vmatpush2.xpose.msra.mxu0 0.0
    %167 = vmatprep.subr.mxu0 0.0
    %168 = vmatpush2.xpose.msra.mxu0 0.0
    %169 = vmatprep.subr.mxu0 0.0
    %170 = vmatpush2.xpose.msra.mxu0 0.0
    %171 = vmatprep.subr.mxu0 0.0
    %172 = vmatpush2.xpose.msra.mxu0 0.0
    %173 = vmatprep.subr.mxu0 0.0
    %174 = vmatpush2.xpose.msra.mxu0 0.0
    %175 = vmatprep.subr.mxu0 0.0
    %176 = vmatpush2.xpose.msra.mxu0 0.0
    %177 = vmatprep.subr.mxu0 0.0
    %178 = vmatpush2.xpose.msra.mxu0 0.0
    %179 = vmatprep.subr.mxu0 0.0
    %180 = vmatpush2.xpose.msra.mxu0 0.0
    %181 = vmatprep.subr.mxu0 0.0
    %182 = vmatpush2.xpose.msra.mxu0 0.0
    %183 = vmatprep.subr.mxu0 0.0
    %184 = vmatpush2.xpose.msra.mxu0 0.0
    %185 = vmatprep.subr.mxu0 0.0
    %186 = vmatpush2.xpose.msra.mxu0 0.0
    %187 = vmatprep.mubr.f32.mxu0 0.0
    %v188 = vand.u32 %v37, 4294901760
    %189 = vmatmul.mubr.f32.gmra.mxu0 %v188
    %v190 = vpop.f32.mrf.mxu0
    %v191 = vadd.f32 %v115, %v190
    %v192 = vpop.f32.mrf.mxu0
    %193 = vdwg.mxu0
    %194 = vmatprep.subr.mxu0 0.0
    %195 = vmatpush1.xpose.msra.mxu0 0.0
    %196 = vmatprep.subr.mxu0 0.0
    %197 = vmatpush1.xpose.msra.mxu0 0.0
    %198 = vmatprep.subr.mxu0 0.0
    %199 = vmatpush1.xpose.msra.mxu0 0.0
    %200 = vmatprep.subr.mxu0 0.0
    %201 = vmatpush1.xpose.msra.mxu0 0.0
    %202 = vmatprep.subr.mxu0 0.0
    %203 = vmatpush1.xpose.msra.mxu0 0.0
    %204 = vmatprep.subr.mxu0 0.0
    %205 = vmatpush1.xpose.msra.mxu0 0.0
    %206 = vmatprep.subr.mxu0 0.0
    %207 = vmatpush1.xpose.msra.mxu0 0.0
    %208 = vmatprep.subr.mxu0 0.0
    %209 = vmatpush1.xpose.msra.mxu0 0.0
    %210 = vmatprep.subr.mxu0 0.0
    %211 = vmatpush1.xpose.msra.mxu0 0.0
    %212 = vmatprep.subr.mxu0 0.0
    %213 = vmatpush1.xpose.msra.mxu0 0.0
    %214 = vmatprep.subr.mxu0 0.0
    %215 = vmatpush1.xpose.msra.mxu0 0.0
    %216 = vmatprep.subr.mxu0 0.0
    %217 = vmatpush1.xpose.msra.mxu0 0.0
    %218 = vmatprep.subr.mxu0 0.0
    %219 = vmatpush1.xpose.msra.mxu0 0.0
    %220 = vmatprep.subr.mxu0 0.0
    %221 = vmatpush1.xpose.msra.mxu0 0.0
    %222 = vmatprep.subr.mxu0 0.0
    %223 = vmatpush1.xpose.msra.mxu0 0.0
    %224 = vmatprep.subr.mxu0 0.0
    %v225 = vand.u32 %v40, 4294901760
    %v226 = vsub.f32 %v40, %v225
    %227 = vmatpush1.xpose.msra.mxu0 %v226
    %228 = vmatprep.subr.mxu0 0.0
    %229 = vmatpush2.xpose.msra.mxu0 0.0
    %230 = vmatprep.subr.mxu0 0.0
    %231 = vmatpush2.xpose.msra.mxu0 0.0
    %232 = vmatprep.subr.mxu0 0.0
    %233 = vmatpush2.xpose.msra.mxu0 0.0
    %234 = vmatprep.subr.mxu0 0.0
    %235 = vmatpush2.xpose.msra.mxu0 0.0
    %236 = vmatprep.subr.mxu0 0.0
    %237 = vmatpush2.xpose.msra.mxu0 0.0
    %238 = vmatprep.subr.mxu0 0.0
    %239 = vmatpush2.xpose.msra.mxu0 0.0
    %240 = vmatprep.subr.mxu0 0.0
    %241 = vmatpush2.xpose.msra.mxu0 0.0
    %242 = vmatprep.subr.mxu0 0.0
    %243 = vmatpush2.xpose.msra.mxu0 0.0
    %244 = vmatprep.subr.mxu0 0.0
    %245 = vmatpush2.xpose.msra.mxu0 0.0
    %246 = vmatprep.subr.mxu0 0.0
    %247 = vmatpush2.xpose.msra.mxu0 0.0
    %248 = vmatprep.subr.mxu0 0.0
    %249 = vmatpush2.xpose.msra.mxu0 0.0
    %250 = vmatprep.subr.mxu0 0.0
    %251 = vmatpush2.xpose.msra.mxu0 0.0
    %252 = vmatprep.subr.mxu0 0.0
    %253 = vmatpush2.xpose.msra.mxu0 0.0
    %254 = vmatprep.subr.mxu0 0.0
    %255 = vmatpush2.xpose.msra.mxu0 0.0
    %256 = vmatprep.subr.mxu0 0.0
    %257 = vmatpush2.xpose.msra.mxu0 0.0
    %258 = vmatprep.subr.mxu0 0.0
    %259 = vmatpush2.xpose.msra.mxu0 0.0
    %260 = vmatprep.mubr.f32.mxu0 0.0
    %v261 = vand.u32 %v37, 4294901760
    %v262 = vsub.f32 %v37, %v261
    %263 = vmatmul.mubr.f32.gmra.mxu0 %v262
    %v264 = vpop.f32.mrf.mxu0
    %v265 = vadd.f32 %v191, %v264
    %v266 = vpop.f32.mrf.mxu0
    %267 = vdwg.mxu0
    %268 = vmatprep.subr.mxu0 0.0
    %269 = vmatpush1.xpose.msra.mxu0 0.0
    %270 = vmatprep.subr.mxu0 0.0
    %271 = vmatpush1.xpose.msra.mxu0 0.0
    %272 = vmatprep.subr.mxu0 0.0
    %273 = vmatpush1.xpose.msra.mxu0 0.0
    %274 = vmatprep.subr.mxu0 0.0
    %275 = vmatpush1.xpose.msra.mxu0 0.0
    %276 = vmatprep.subr.mxu0 0.0
    %277 = vmatpush1.xpose.msra.mxu0 0.0
    %278 = vmatprep.subr.mxu0 0.0
    %279 = vmatpush1.xpose.msra.mxu0 0.0
    %280 = vmatprep.subr.mxu0 0.0
    %281 = vmatpush1.xpose.msra.mxu0 0.0
    %282 = vmatprep.subr.mxu0 0.0
    %283 = vmatpush1.xpose.msra.mxu0 0.0
    %284 = vmatprep.subr.mxu0 0.0
    %285 = vmatpush1.xpose.msra.mxu0 0.0
    %286 = vmatprep.subr.mxu0 0.0
    %287 = vmatpush1.xpose.msra.mxu0 0.0
    %288 = vmatprep.subr.mxu0 0.0
    %289 = vmatpush1.xpose.msra.mxu0 0.0
    %290 = vmatprep.subr.mxu0 0.0
    %291 = vmatpush1.xpose.msra.mxu0 0.0
    %292 = vmatprep.subr.mxu0 0.0
    %293 = vmatpush1.xpose.msra.mxu0 0.0
    %294 = vmatprep.subr.mxu0 0.0
    %295 = vmatpush1.xpose.msra.mxu0 0.0
    %296 = vmatprep.subr.mxu0 0.0
    %297 = vmatpush1.xpose.msra.mxu0 0.0
    %298 = vmatprep.subr.mxu0 0.0
    %v299 = vand.u32 %v40, 4294901760
    %300 = vmatpush1.xpose.msra.mxu0 %v299
    %301 = vmatprep.subr.mxu0 0.0
    %302 = vmatpush2.xpose.msra.mxu0 0.0
    %303 = vmatprep.subr.mxu0 0.0
    %304 = vmatpush2.xpose.msra.mxu0 0.0
    %305 = vmatprep.subr.mxu0 0.0
    %306 = vmatpush2.xpose.msra.mxu0 0.0
    %307 = vmatprep.subr.mxu0 0.0
    %308 = vmatpush2.xpose.msra.mxu0 0.0
    %309 = vmatprep.subr.mxu0 0.0
    %310 = vmatpush2.xpose.msra.mxu0 0.0
    %311 = vmatprep.subr.mxu0 0.0
    %312 = vmatpush2.xpose.msra.mxu0 0.0
    %313 = vmatprep.subr.mxu0 0.0
    %314 = vmatpush2.xpose.msra.mxu0 0.0
    %315 = vmatprep.subr.mxu0 0.0
    %316 = vmatpush2.xpose.msra.mxu0 0.0
    %317 = vmatprep.subr.mxu0 0.0
    %318 = vmatpush2.xpose.msra.mxu0 0.0
    %319 = vmatprep.subr.mxu0 0.0
    %320 = vmatpush2.xpose.msra.mxu0 0.0
    %321 = vmatprep.subr.mxu0 0.0
    %322 = vmatpush2.xpose.msra.mxu0 0.0
    %323 = vmatprep.subr.mxu0 0.0
    %324 = vmatpush2.xpose.msra.mxu0 0.0
    %325 = vmatprep.subr.mxu0 0.0
    %326 = vmatpush2.xpose.msra.mxu0 0.0
    %327 = vmatprep.subr.mxu0 0.0
    %328 = vmatpush2.xpose.msra.mxu0 0.0
    %329 = vmatprep.subr.mxu0 0.0
    %330 = vmatpush2.xpose.msra.mxu0 0.0
    %331 = vmatprep.subr.mxu0 0.0
    %332 = vmatpush2.xpose.msra.mxu0 0.0
    %333 = vmatprep.mubr.f32.mxu0 0.0
    %v334 = vand.u32 %v37, 4294901760
    %v335 = vsub.f32 %v37, %v334
    %v336 = vand.u32 %v335, 4294901760
    %337 = vmatmul.mubr.f32.gmra.mxu0 %v336
    %v338 = vpop.f32.mrf.mxu0
    %v339 = vadd.f32 %v265, %v338
    %v340 = vpop.f32.mrf.mxu0
    %341 = vdwg.mxu0
    %342 = vmatprep.subr.mxu0 0.0
    %343 = vmatpush1.xpose.msra.mxu0 0.0
    %344 = vmatprep.subr.mxu0 0.0
    %345 = vmatpush1.xpose.msra.mxu0 0.0
    %346 = vmatprep.subr.mxu0 0.0
    %347 = vmatpush1.xpose.msra.mxu0 0.0
    %348 = vmatprep.subr.mxu0 0.0
    %349 = vmatpush1.xpose.msra.mxu0 0.0
    %350 = vmatprep.subr.mxu0 0.0
    %351 = vmatpush1.xpose.msra.mxu0 0.0
    %352 = vmatprep.subr.mxu0 0.0
    %353 = vmatpush1.xpose.msra.mxu0 0.0
    %354 = vmatprep.subr.mxu0 0.0
    %355 = vmatpush1.xpose.msra.mxu0 0.0
    %356 = vmatprep.subr.mxu0 0.0
    %357 = vmatpush1.xpose.msra.mxu0 0.0
    %358 = vmatprep.subr.mxu0 0.0
    %359 = vmatpush1.xpose.msra.mxu0 0.0
    %360 = vmatprep.subr.mxu0 0.0
    %361 = vmatpush1.xpose.msra.mxu0 0.0
    %362 = vmatprep.subr.mxu0 0.0
    %363 = vmatpush1.xpose.msra.mxu0 0.0
    %364 = vmatprep.subr.mxu0 0.0
    %365 = vmatpush1.xpose.msra.mxu0 0.0
    %366 = vmatprep.subr.mxu0 0.0
    %367 = vmatpush1.xpose.msra.mxu0 0.0
    %368 = vmatprep.subr.mxu0 0.0
    %369 = vmatpush1.xpose.msra.mxu0 0.0
    %370 = vmatprep.subr.mxu0 0.0
    %371 = vmatpush1.xpose.msra.mxu0 0.0
    %372 = vmatprep.subr.mxu0 0.0
    %v373 = vand.u32 %v40, 4294901760
    %v374 = vsub.f32 %v40, %v373
    %v375 = vand.u32 %v374, 4294901760
    %376 = vmatpush1.xpose.msra.mxu0 %v375
    %377 = vmatprep.subr.mxu0 0.0
    %378 = vmatpush2.xpose.msra.mxu0 0.0
    %379 = vmatprep.subr.mxu0 0.0
    %380 = vmatpush2.xpose.msra.mxu0 0.0
    %381 = vmatprep.subr.mxu0 0.0
    %382 = vmatpush2.xpose.msra.mxu0 0.0
    %383 = vmatprep.subr.mxu0 0.0
    %384 = vmatpush2.xpose.msra.mxu0 0.0
    %385 = vmatprep.subr.mxu0 0.0
    %386 = vmatpush2.xpose.msra.mxu0 0.0
    %387 = vmatprep.subr.mxu0 0.0
    %388 = vmatpush2.xpose.msra.mxu0 0.0
    %389 = vmatprep.subr.mxu0 0.0
    %390 = vmatpush2.xpose.msra.mxu0 0.0
    %391 = vmatprep.subr.mxu0 0.0
    %392 = vmatpush2.xpose.msra.mxu0 0.0
    %393 = vmatprep.subr.mxu0 0.0
    %394 = vmatpush2.xpose.msra.mxu0 0.0
    %395 = vmatprep.subr.mxu0 0.0
    %396 = vmatpush2.xpose.msra.mxu0 0.0
    %397 = vmatprep.subr.mxu0 0.0
    %398 = vmatpush2.xpose.msra.mxu0 0.0
    %399 = vmatprep.subr.mxu0 0.0
    %400 = vmatpush2.xpose.msra.mxu0 0.0
    %401 = vmatprep.subr.mxu0 0.0
    %402 = vmatpush2.xpose.msra.mxu0 0.0
    %403 = vmatprep.subr.mxu0 0.0
    %404 = vmatpush2.xpose.msra.mxu0 0.0
    %405 = vmatprep.subr.mxu0 0.0
    %406 = vmatpush2.xpose.msra.mxu0 0.0
    %407 = vmatprep.subr.mxu0 0.0
    %408 = vmatpush2.xpose.msra.mxu0 0.0
    %409 = vmatprep.mubr.f32.mxu0 0.0
    %v410 = vand.u32 %v37, 4294901760
    %411 = vmatmul.mubr.f32.gmra.mxu0 %v410
    %v412 = vpop.f32.mrf.mxu0
    %v413 = vadd.f32 %v339, %v412
    %v414 = vpop.f32.mrf.mxu0
    %415 = vdwg.mxu0
    %416 = vmatprep.subr.mxu0 0.0
    %417 = vmatpush1.xpose.msra.mxu0 0.0
    %418 = vmatprep.subr.mxu0 0.0
    %419 = vmatpush1.xpose.msra.mxu0 0.0
    %420 = vmatprep.subr.mxu0 0.0
    %421 = vmatpush1.xpose.msra.mxu0 0.0
    %422 = vmatprep.subr.mxu0 0.0
    %423 = vmatpush1.xpose.msra.mxu0 0.0
    %424 = vmatprep.subr.mxu0 0.0
    %425 = vmatpush1.xpose.msra.mxu0 0.0
    %426 = vmatprep.subr.mxu0 0.0
    %427 = vmatpush1.xpose.msra.mxu0 0.0
    %428 = vmatprep.subr.mxu0 0.0
    %429 = vmatpush1.xpose.msra.mxu0 0.0
    %430 = vmatprep.subr.mxu0 0.0
    %431 = vmatpush1.xpose.msra.mxu0 0.0
    %432 = vmatprep.subr.mxu0 0.0
    %433 = vmatpush1.xpose.msra.mxu0 0.0
    %434 = vmatprep.subr.mxu0 0.0
    %435 = vmatpush1.xpose.msra.mxu0 0.0
    %436 = vmatprep.subr.mxu0 0.0
    %437 = vmatpush1.xpose.msra.mxu0 0.0
    %438 = vmatprep.subr.mxu0 0.0
    %439 = vmatpush1.xpose.msra.mxu0 0.0
    %440 = vmatprep.subr.mxu0 0.0
    %441 = vmatpush1.xpose.msra.mxu0 0.0
    %442 = vmatprep.subr.mxu0 0.0
    %443 = vmatpush1.xpose.msra.mxu0 0.0
    %444 = vmatprep.subr.mxu0 0.0
    %445 = vmatpush1.xpose.msra.mxu0 0.0
    %446 = vmatprep.subr.mxu0 0.0
    %v447 = vand.u32 %v40, 4294901760
    %448 = vmatpush1.xpose.msra.mxu0 %v447
    %449 = vmatprep.subr.mxu0 0.0
    %450 = vmatpush2.xpose.msra.mxu0 0.0
    %451 = vmatprep.subr.mxu0 0.0
    %452 = vmatpush2.xpose.msra.mxu0 0.0
    %453 = vmatprep.subr.mxu0 0.0
    %454 = vmatpush2.xpose.msra.mxu0 0.0
    %455 = vmatprep.subr.mxu0 0.0
    %456 = vmatpush2.xpose.msra.mxu0 0.0
    %457 = vmatprep.subr.mxu0 0.0
    %458 = vmatpush2.xpose.msra.mxu0 0.0
    %459 = vmatprep.subr.mxu0 0.0
    %460 = vmatpush2.xpose.msra.mxu0 0.0
    %461 = vmatprep.subr.mxu0 0.0
    %462 = vmatpush2.xpose.msra.mxu0 0.0
    %463 = vmatprep.subr.mxu0 0.0
    %464 = vmatpush2.xpose.msra.mxu0 0.0
    %465 = vmatprep.subr.mxu0 0.0
    %466 = vmatpush2.xpose.msra.mxu0 0.0
    %467 = vmatprep.subr.mxu0 0.0
    %468 = vmatpush2.xpose.msra.mxu0 0.0
    %469 = vmatprep.subr.mxu0 0.0
    %470 = vmatpush2.xpose.msra.mxu0 0.0
    %471 = vmatprep.subr.mxu0 0.0
    %472 = vmatpush2.xpose.msra.mxu0 0.0
    %473 = vmatprep.subr.mxu0 0.0
    %474 = vmatpush2.xpose.msra.mxu0 0.0
    %475 = vmatprep.subr.mxu0 0.0
    %476 = vmatpush2.xpose.msra.mxu0 0.0
    %477 = vmatprep.subr.mxu0 0.0
    %478 = vmatpush2.xpose.msra.mxu0 0.0
    %479 = vmatprep.subr.mxu0 0.0
    %480 = vmatpush2.xpose.msra.mxu0 0.0
    %481 = vmatprep.mubr.f32.mxu0 0.0
    %v482 = vand.u32 %v37, 4294901760
    %483 = vmatmul.mubr.f32.gmra.mxu0 %v482
    %v484 = vpop.f32.mrf.mxu0
    %v485 = vadd.f32 %v413, %v484
    %v486 = vpop.f32.mrf.mxu0
    %487 = vdwg.mxu0
    %vm488 = vcmask 58368
    %489 = vst.msk [vmem:[#allocation5] sm:$0x3] %vm488, %v485
    // Predicated region
    $region18: #{tpu_custom_call.1} parent=1 // pred_check
      _
    $region19: #{tpu_custom_call.1} parent=1 // pred_check_branch
      %491 = sbr.rel (0) target = $region21
    $region20: #{tpu_custom_call.1} parent=1 // pred_region
      %s493 = ssub.s32 32, 32
      %494 = vsyncadd [#allocation4], %s493
      %s496 = sshll.u32 [#allocation5], 4
      %s497 = int_to_ptr.vmem [resolvable:$true] %s496
      %499 = dma.vmem_to_hbm [thread:$0]  %s497, 32, %s3, [#allocation4]
    $region21: #{tpu_custom_call.1} parent=1 // pred_fallthru
      _
    // Predicated region
    $region22: #{tpu_custom_call.1} parent=1 // pred_check
      _
    $region23: #{tpu_custom_call.1} parent=1 // pred_check_branch
      %501 = sbr.rel (0) target = $region25
    $region24: #{tpu_custom_call.1} parent=1 // pred_region
      %502 = dma.done [#allocation4], 32
    $region25: #{tpu_custom_call.1} parent=1 // pred_fallthru
      _
    %503 = vsyncpa [#allocation3], 1
    %504 = vsyncpa [#allocation4], 1

</llo_original>
